<compile_context>
chip_gen: v7x
topology: tpu7x:2x2x1
jax: 0.10.0
libtpu: 0.0.40
codegen_flags: <defaults>
</compile_context>

<pallas_src>
import functools

import jax
import jax.numpy as jnp
import numpy as np
from jax.experimental import pallas as pl
from jax.experimental.pallas import tpu as pltpu


# Scoring-kernel tiling constants (shared by table prep and the kernel wrapper).
_TILE_E = 2048     # entity rows per grid step (upper bound; big steps amortize ~0.35us/step)
_CHUNK_E = 256     # entity rows per in-kernel slab (bounds live temporaries well under vregs)
_TILE_Q = 8        # query rows per grid step


def _round_up(x, m):
    return ((x + m - 1) // m) * m


def _pick_entity_tiling(E):
    """Return (E_pad, tile_e): E_pad multiple of tile_e, tile_e multiple of _CHUNK_E (=>128)."""
    E_pad = _round_up(E, _CHUNK_E)
    n = E_pad // _CHUNK_E
    tile_e = _CHUNK_E
    for k in range(_TILE_E // _CHUNK_E, 0, -1):
        if n % k == 0:
            tile_e = k * _CHUNK_E
            break
    if tile_e < 1024 and E > 4 * _TILE_E:
        # Very large tables with awkward factors: pad a bit more, keep big grid steps.
        tile_e = _TILE_E
        E_pad = _round_up(E, _TILE_E)
    return E_pad, tile_e


def _elementwise_compute_dtype():
    """bf16 elementwise on chips with bf16 VALUs (v6e/v7x); f32 on v5e and older / non-TPU."""
    try:
        kind = jax.devices()[0].device_kind.lower()
    except Exception:
        return jnp.float32
    if "tpu" not in kind:
        return jnp.float32
    if any(v in kind for v in ("v2", "v3", "v4", "v5")):
        return jnp.float32
    return jnp.bfloat16


# ----------------------------- Pallas kernels -----------------------------

def fused_intersection_kernel(c_emb_ref, o_emb_ref,
                              cw1_ref, cb1_ref, cw2_ref, cb2_ref,
                              ow1_ref, ob1_ref, ow2_ref, ob2_ref,
                              c_out_ref, o_out_ref):
    # CenterIntersection: Linear -> ReLU -> Linear -> softmax(dim=0) -> weighted sum.
    # MXU matmuls take bf16 inputs (weights pre-cast in the wrapper) with f32 accumulation.
    c_emb = c_emb_ref[...]                                   # (K, TB, D) f32
    K, TB, D = c_emb.shape
    x = c_emb.reshape(K * TB, D).astype(jnp.bfloat16)
    h1 = jnp.maximum(
        jnp.dot(x, cw1_ref[...], preferred_element_type=jnp.float32) + cb1_ref[...], 0.0)
    logits = (jnp.dot(h1.astype(jnp.bfloat16), cw2_ref[...],
                      preferred_element_type=jnp.float32) + cb2_ref[...]).reshape(K, TB, D)
    m = jnp.max(logits, axis=0, keepdims=True)
    ex = jnp.exp(logits - m)
    att = ex / jnp.sum(ex, axis=0, keepdims=True)
    c_out_ref[...] = jnp.sum(att * c_emb, axis=0)

    # BoxOffsetIntersection: Linear -> ReLU -> mean(dim=0) -> Linear -> sigmoid; min(dim=0)*gate.
    o_emb = o_emb_ref[...]                                   # (K, TB, D) f32
    x = o_emb.reshape(K * TB, D).astype(jnp.bfloat16)
    h1 = jnp.maximum(
        jnp.dot(x, ow1_ref[...], preferred_element_type=jnp.float32) + ob1_ref[...], 0.0)
    h1_mean = jnp.mean(h1.reshape(K, TB, D), axis=0)         # (TB, D) f32
    gate = jax.nn.sigmoid(
        jnp.dot(h1_mean.astype(jnp.bfloat16), ow2_ref[...],
                preferred_element_type=jnp.float32) + ob2_ref[...])
    o_out_ref[...] = jnp.min(o_emb, axis=0) * gate


def cal_logit_kernel(ent_ref, center_ref, offset_ref, out_ref, *,
                     one_minus_cen, compute_dtype, chunk_e):
    # ent_ref: (TE, D) bf16; center/offset: (TQ, D) f32; out: (TQ, TE) f32 (already negated).
    TQ = center_ref.shape[0]
    TE = ent_ref.shape[0]
    n_chunks = TE // chunk_e

    # Hoist the tiny per-query center/offset rows (and their casts) out of the chunk loop.
    cs = [center_ref[q:q + 1, :].astype(compute_dtype) for q in range(TQ)]
    offs = [offset_ref[q:q + 1, :].astype(compute_dtype) for q in range(TQ)]

    for ci in range(n_chunks):
        c0 = ci * chunk_e
        # Entity slab loaded/cast once per chunk, reused for all TQ query rows.
        e3 = ent_ref[c0:c0 + chunk_e, :].astype(compute_dtype)[None, :, :]   # (1, chunk_e, D)
        for q in range(TQ):
            delta = jnp.abs(e3 - cs[q][:, None, :])                          # (1, chunk_e, D)
            dmin = jnp.minimum(delta, offs[q][:, None, :])
            # relu(delta-off) == delta - min(delta,off)  (exact), so
            #   score = -dist = (1-cen)*sum(min) - sum(delta)
            # Reductions accumulate in f32 regardless of compute dtype.
            s_delta = jnp.sum(delta, axis=-1, dtype=jnp.float32)             # (1, chunk_e)
            s_min = jnp.sum(dmin, axis=-1, dtype=jnp.float32)
            out_ref[q:q + 1, c0:c0 + chunk_e] = one_minus_cen * s_min - s_delta


# ----------------------------- wrappers -----------------------------

def run_intersections(c_stack, o_stack, params, *, tile_b=128):
    """One pallas_call computing both intersections, B-tiled with resident weights."""
    K, B, D = c_stack.shape
    tb = min(tile_b, _round_up(B, 8))
    B_pad = _round_up(B, tb)
    if B_pad != B:
        c_stack = jnp.pad(c_stack, ((0, 0), (0, B_pad - B), (0, 0)))
        o_stack = jnp.pad(o_stack, ((0, 0), (0, B_pad - B), (0, 0)))

    # MLP weights fed to the MXU in bf16 (f32 accumulation); biases stay f32.
    args = (c_stack, o_stack,
            params["c_w1"].astype(jnp.bfloat16), params["c_b1"],
            params["c_w2"].astype(jnp.bfloat16), params["c_b2"],
            params["o_w1"].astype(jnp.bfloat16), params["o_b1"],
            params["o_w2"].astype(jnp.bfloat16), params["o_b2"])

    stack_spec = pl.BlockSpec((K, tb, D), lambda i: (0, i, 0))

    def resident(shape):           # weights/biases keep block index 0 -> stay in VMEM
        n = len(shape)
        return pl.BlockSpec(shape, lambda i, _n=n: (0,) * _n)

    out_spec = pl.BlockSpec((tb, D), lambda i: (i, 0))
    c_out, o_out = pl.pallas_call(
        fused_intersection_kernel,
        out_shape=(jax.ShapeDtypeStruct((B_pad, D), jnp.float32),
                   jax.ShapeDtypeStruct((B_pad, D), jnp.float32)),
        grid=(B_pad // tb,),
        in_specs=[stack_spec, stack_spec] + [resident(a.shape) for a in args[2:]],
        out_specs=(out_spec, out_spec),
        compiler_params=pltpu.CompilerParams(dimension_semantics=("parallel",)),
    )(*args)
    if B_pad != B:
        c_out, o_out = c_out[:B], o_out[:B]
    return c_out, o_out


def prepare_entity_table(ent_emb):
    """One-time prep (hoisted out of the forward path): bf16 entity table, padded so the
    row count is a multiple of the entity tile (itself a multiple of 128 -> lane-dense)."""
    E, _ = ent_emb.shape
    E_pad, _ = _pick_entity_tiling(E)
    ent_lp = ent_emb.astype(jnp.bfloat16)
    if E_pad != E:
        ent_lp = jnp.pad(ent_lp, ((0, E_pad - E), (0, 0)))
    return ent_lp


def cal_logit_pallas(ent_lp, nentity, centers, offsets, cen):
    """scores = -dist_box over all entities (negation folded into the kernel)."""
    E_pad, D = ent_lp.shape
    exp_E_pad, tile_e = _pick_entity_tiling(nentity)
    assert exp_E_pad == E_pad, "entity table was not produced by prepare_entity_table"

    Q = centers.shape[0]
    Q_pad = _round_up(Q, _TILE_Q)
    if Q_pad != Q:
        centers = jnp.pad(centers, ((0, Q_pad - Q), (0, 0)))
        offsets = jnp.pad(offsets, ((0, Q_pad - Q), (0, 0)))

    # q is the fastest grid axis -> the entity tile block index is unchanged across
    # consecutive steps, so each entity tile is DMA'd from HBM exactly once.
    grid = (E_pad // tile_e, Q_pad // _TILE_Q)

    kernel = functools.partial(
        cal_logit_kernel,
        one_minus_cen=float(1.0 - cen),
        compute_dtype=_elementwise_compute_dtype(),
        chunk_e=_CHUNK_E)

    out = pl.pallas_call(
        kernel,
        out_shape=jax.ShapeDtypeStruct((Q_pad, E_pad), jnp.float32),
        grid=grid,
        in_specs=[pl.BlockSpec((tile_e, D), lambda ei, qi: (ei, 0)),
                  pl.BlockSpec((_TILE_Q, D), lambda ei, qi: (qi, 0)),
                  pl.BlockSpec((_TILE_Q, D), lambda ei, qi: (qi, 0))],
        out_specs=pl.BlockSpec((_TILE_Q, tile_e), lambda ei, qi: (qi, ei)),
        compiler_params=pltpu.CompilerParams(
            dimension_semantics=("parallel", "parallel"),   # v7x: grid split across both TCs
            vmem_limit_bytes=32 * 1024 * 1024),              # well under v7x's 64 MiB VMEM
    )(ent_lp, centers, offsets)

    if Q_pad != Q:
        out = out[:Q]
    if E_pad != nentity:
        # TODO(synk): at production sizes keep the padded width and mask downstream
        # instead of materializing this slice.
        out = out[:, :nentity]
    return out


# ----------------------------- parameters -----------------------------

def _xavier_uniform(key, shape):
    fan_in, fan_out = shape[-2], shape[-1]
    bound = float(np.sqrt(6.0 / (fan_in + fan_out)))
    return jax.random.uniform(key, shape, jnp.float32, -bound, bound)


def init_params(key, nentity, nrelation, hidden_dim):
    ks = jax.random.split(key, 11)
    D = hidden_dim
    b = 1.0 / float(np.sqrt(D))
    return dict(
        ent_emb=_xavier_uniform(ks[0], (nentity, D)),
        rel_emb=_xavier_uniform(ks[1], (nrelation, D)),
        off_emb=_xavier_uniform(ks[2], (nrelation, D)),
        # CenterIntersection (weights stored (in, out) so x @ W == torch x @ W.T)
        c_w1=_xavier_uniform(ks[3], (D, D)),
        c_b1=jax.random.uniform(ks[4], (1, D), jnp.float32, -b, b),
        c_w2=_xavier_uniform(ks[5], (D, D)),
        c_b2=jax.random.uniform(ks[6], (1, D), jnp.float32, -b, b),
        # BoxOffsetIntersection
        o_w1=_xavier_uniform(ks[7], (D, D)),
        o_b1=jax.random.uniform(ks[8], (1, D), jnp.float32, -b, b),
        o_w2=_xavier_uniform(ks[9], (D, D)),
        o_b2=jax.random.uniform(ks[10], (1, D), jnp.float32, -b, b),
    )


# ----------------------------- Query2Box forward (eval) -----------------------------

def query2box_forward_pallas(params, ent_table, q1p, q2i, cen):
    ent, rel, off = params["ent_emb"], params["rel_emb"], params["off_emb"]
    nentity = ent.shape[0]

    # 1p queries ('e', ('r',)) : center = ent[h] + rel[r]; offset = Identity(off[r])
    c1 = ent[q1p[:, 0]] + rel[q1p[:, 1]]
    o1 = off[q1p[:, 1]]

    # 2i queries (('e',('r',)), ('e',('r',)))
    cA = ent[q2i[:, 0]] + rel[q2i[:, 1]]
    oA = off[q2i[:, 1]]
    cB = ent[q2i[:, 2]] + rel[q2i[:, 3]]
    oB = off[q2i[:, 3]]
    c_stack = jnp.stack([cA, cB], axis=0)   # (2, B, D)
    o_stack = jnp.stack([oA, oB], axis=0)

    c2, o2 = run_intersections(c_stack, o_stack, params)

    centers = jnp.concatenate([c1, c2], axis=0)   # (Q_total, D)
    offsets = jnp.concatenate([o1, o2], axis=0)

    # eval branch: scores = -cal_logit(ent_embeddings.weight, centers[:,None], offsets[:,None])
    # The negation is folded into the scoring kernel (no extra pass over the (Q,E) matrix).
    return cal_logit_pallas(ent_table, nentity, centers, offsets, cen)


def query2box_forward_reference(params, q1p, q2i, cen):
    """Pure-JAX f32 reference mirroring the PyTorch forward semantics."""
    ent, rel, off = params["ent_emb"], params["rel_emb"], params["off_emb"]
    c1 = ent[q1p[:, 0]] + rel[q1p[:, 1]]
    o1 = off[q1p[:, 1]]

    cA = ent[q2i[:, 0]] + rel[q2i[:, 1]]
    oA = off[q2i[:, 1]]
    cB = ent[q2i[:, 2]] + rel[q2i[:, 3]]
    oB = off[q2i[:, 3]]
    c_stack = jnp.stack([cA, cB], axis=0)
    o_stack = jnp.stack([oA, oB], axis=0)
    K, B, D = c_stack.shape

    # CenterIntersection
    x = c_stack.reshape(K * B, D)
    h1 = jax.nn.relu(x @ params["c_w1"] + params["c_b1"])
    logits = (h1 @ params["c_w2"] + params["c_b2"]).reshape(K, B, D)
    att = jax.nn.softmax(logits, axis=0)
    c2 = jnp.sum(att * c_stack, axis=0)

    # BoxOffsetIntersection
    x = o_stack.reshape(K * B, D)
    h1 = jax.nn.relu(x @ params["o_w1"] + params["o_b1"])
    gate = jax.nn.sigmoid(jnp.mean(h1.reshape(K, B, D), axis=0) @ params["o_w2"]
                          + params["o_b2"])
    o2 = jnp.min(o_stack, axis=0) * gate

    centers = jnp.concatenate([c1, c2], axis=0)[:, None, :]
    offsets = jnp.concatenate([o1, o2], axis=0)[:, None, :]
    delta = jnp.abs(ent[None, :, :] - centers)
    d_out = jax.nn.relu(delta - offsets)
    d_in = jnp.minimum(delta, offsets)
    dist = jnp.sum(d_out, axis=-1) + cen * jnp.sum(d_in, axis=-1)
    return -dist


# ----------------------------- main -----------------------------

if __name__ == "__main__":
    nentity, nrelation, hidden_dim = 256, 16, 128
    cen = 0.2  # box_mode = ('none', 0.2)  -> func = Identity
    Q1, Q2 = 4, 4

    key = jax.random.PRNGKey(0)
    kp, kq = jax.random.split(key)
    params = init_params(kp, nentity, nrelation, hidden_dim)

    # One-time preprocessing (hoisted out of the forward path): bf16 + padded entity table.
    ent_table = prepare_entity_table(params["ent_emb"])

    kh1, kr1, kh2a, kr2a, kh2b, kr2b = jax.random.split(kq, 6)
    q1p = jnp.stack([jax.random.randint(kh1, (Q1,), 0, nentity),
                     jax.random.randint(kr1, (Q1,), 0, nrelation)], axis=1)
    q2i = jnp.stack([jax.random.randint(kh2a, (Q2,), 0, nentity),
                     jax.random.randint(kr2a, (Q2,), 0, nrelation),
                     jax.random.randint(kh2b, (Q2,), 0, nentity),
                     jax.random.randint(kr2b, (Q2,), 0, nrelation)], axis=1)

    scores = query2box_forward_pallas(params, ent_table, q1p, q2i, cen)
    scores = jax.block_until_ready(scores)

    ref = jax.block_until_ready(query2box_forward_reference(params, q1p, q2i, cen))
    # Tolerance covers bf16 streaming of the entity table and bf16 MXU/elementwise compute
    # (reference stays f32).
    np.testing.assert_allclose(np.asarray(scores), np.asarray(ref),
                               rtol=2e-2, atol=2e-2)

    print("KERNEL_OK")
</pallas_src>

<mosaic_0001>
module attributes {stable_mosaic.version = 11 : i64} {
  func.func @fused_intersection_kernel(%arg0: i32, %arg1: memref<2x8x128xf32, #tpu.memory_space<vmem>>, %arg2: memref<2x8x128xf32, #tpu.memory_space<vmem>>, %arg3: memref<128x128xbf16, #tpu.memory_space<vmem>>, %arg4: memref<1x128xf32, #tpu.memory_space<vmem>>, %arg5: memref<128x128xbf16, #tpu.memory_space<vmem>>, %arg6: memref<1x128xf32, #tpu.memory_space<vmem>>, %arg7: memref<128x128xbf16, #tpu.memory_space<vmem>>, %arg8: memref<1x128xf32, #tpu.memory_space<vmem>>, %arg9: memref<128x128xbf16, #tpu.memory_space<vmem>>, %arg10: memref<1x128xf32, #tpu.memory_space<vmem>>, %arg11: memref<8x128xf32, #tpu.memory_space<vmem>>, %arg12: memref<8x128xf32, #tpu.memory_space<vmem>>) attributes {dimension_semantics = [#tpu.dimension_semantics<parallel>], iteration_bounds = array<i64: 1>, scalar_prefetch = 0 : i64, scratch_operands = 0 : i64, tpu.core_type = #tpu.core_type<tc>, window_params = [{transform_indices = @transform_0, window_bounds = array<i64: 2, 8, 128>}, {transform_indices = @transform_1, window_bounds = array<i64: 2, 8, 128>}, {pipeline_mode = #tpu.pipeline_mode<synchronous>, transform_indices = @transform_2, window_bounds = array<i64: 128, 128>}, {pipeline_mode = #tpu.pipeline_mode<synchronous>, transform_indices = @transform_3, window_bounds = array<i64: 1, 128>}, {pipeline_mode = #tpu.pipeline_mode<synchronous>, transform_indices = @transform_4, window_bounds = array<i64: 128, 128>}, {pipeline_mode = #tpu.pipeline_mode<synchronous>, transform_indices = @transform_5, window_bounds = array<i64: 1, 128>}, {pipeline_mode = #tpu.pipeline_mode<synchronous>, transform_indices = @transform_6, window_bounds = array<i64: 128, 128>}, {pipeline_mode = #tpu.pipeline_mode<synchronous>, transform_indices = @transform_7, window_bounds = array<i64: 1, 128>}, {pipeline_mode = #tpu.pipeline_mode<synchronous>, transform_indices = @transform_8, window_bounds = array<i64: 128, 128>}, {pipeline_mode = #tpu.pipeline_mode<synchronous>, transform_indices = @transform_9, window_bounds = array<i64: 1, 128>}, {transform_indices = @transform_10, window_bounds = array<i64: 8, 128>}, {transform_indices = @transform_11, window_bounds = array<i64: 8, 128>}]} {
    %c0 = arith.constant 0 : index
    %c0_0 = arith.constant 0 : index
    %c0_1 = arith.constant 0 : index
    %0 = vector.load %arg1[%c0, %c0_0, %c0_1] : memref<2x8x128xf32, #tpu.memory_space<vmem>>, vector<2x8x128xf32>
    %1 = vector.shape_cast %0 : vector<2x8x128xf32> to vector<16x128xf32>
    %2 = arith.truncf %1 : vector<16x128xf32> to vector<16x128xbf16>
    %c0_2 = arith.constant 0 : index
    %c0_3 = arith.constant 0 : index
    %3 = vector.load %arg3[%c0_2, %c0_3] : memref<128x128xbf16, #tpu.memory_space<vmem>>, vector<128x128xbf16>
    %cst = arith.constant dense<0.000000e+00> : vector<16x128xf32>
    %4 = tpu.matmul %2, %3, %cst {dimension_numbers = #tpu.dot_dimension_numbers<[1], [0], [0], [1], [0, 0, 1, 1], [], []>} : vector<16x128xbf16>, vector<128x128xbf16>, vector<16x128xf32> -> vector<16x128xf32>
    %c0_4 = arith.constant 0 : index
    %c0_5 = arith.constant 0 : index
    %5 = vector.load %arg4[%c0_4, %c0_5] : memref<1x128xf32, #tpu.memory_space<vmem>>, vector<1x128xf32>
    %6 = vector.broadcast %5 : vector<1x128xf32> to vector<16x128xf32>
    %7 = arith.addf %4, %6 : vector<16x128xf32>
    %cst_6 = arith.constant 0.000000e+00 : f32
    %8 = vector.broadcast %cst_6 : f32 to vector<16x128xf32>
    %9 = arith.maximumf %7, %8 : vector<16x128xf32>
    %10 = arith.truncf %9 : vector<16x128xf32> to vector<16x128xbf16>
    %c0_7 = arith.constant 0 : index
    %c0_8 = arith.constant 0 : index
    %11 = vector.load %arg5[%c0_7, %c0_8] : memref<128x128xbf16, #tpu.memory_space<vmem>>, vector<128x128xbf16>
    %cst_9 = arith.constant dense<0.000000e+00> : vector<16x128xf32>
    %12 = tpu.matmul %10, %11, %cst_9 {dimension_numbers = #tpu.dot_dimension_numbers<[1], [0], [0], [1], [0, 0, 1, 1], [], []>} : vector<16x128xbf16>, vector<128x128xbf16>, vector<16x128xf32> -> vector<16x128xf32>
    %c0_10 = arith.constant 0 : index
    %c0_11 = arith.constant 0 : index
    %13 = vector.load %arg6[%c0_10, %c0_11] : memref<1x128xf32, #tpu.memory_space<vmem>>, vector<1x128xf32>
    %14 = vector.broadcast %13 : vector<1x128xf32> to vector<16x128xf32>
    %15 = arith.addf %12, %14 : vector<16x128xf32>
    %16 = vector.shape_cast %15 : vector<16x128xf32> to vector<2x8x128xf32>
    %cst_12 = arith.constant dense<0xFF800000> : vector<8x128xf32>
    %17 = vector.multi_reduction <maximumf>, %16, %cst_12 [0] : vector<2x8x128xf32> to vector<8x128xf32>
    %18 = vector.shape_cast %17 : vector<8x128xf32> to vector<1x8x128xf32>
    %19 = vector.broadcast %18 : vector<1x8x128xf32> to vector<2x8x128xf32>
    %20 = arith.subf %16, %19 : vector<2x8x128xf32>
    %21 = math.exp %20 : vector<2x8x128xf32>
    %cst_13 = arith.constant dense<0.000000e+00> : vector<8x128xf32>
    %22 = vector.multi_reduction <add>, %21, %cst_13 [0] : vector<2x8x128xf32> to vector<8x128xf32>
    %23 = vector.shape_cast %22 : vector<8x128xf32> to vector<1x8x128xf32>
    %24 = vector.broadcast %23 : vector<1x8x128xf32> to vector<2x8x128xf32>
    %25 = arith.divf %21, %24 : vector<2x8x128xf32>
    %26 = arith.mulf %25, %0 : vector<2x8x128xf32>
    %cst_14 = arith.constant dense<0.000000e+00> : vector<8x128xf32>
    %27 = vector.multi_reduction <add>, %26, %cst_14 [0] : vector<2x8x128xf32> to vector<8x128xf32>
    %c0_15 = arith.constant 0 : index
    %c0_16 = arith.constant 0 : index
    %28 = vector.load %arg11[%c0_15, %c0_16] : memref<8x128xf32, #tpu.memory_space<vmem>>, vector<8x128xf32>
    tpu.vector_store %arg11[%c0_15, %c0_16], %27 {strides = array<i32>} : memref<8x128xf32, #tpu.memory_space<vmem>>, vector<8x128xf32>,
    %c0_17 = arith.constant 0 : index
    %c0_18 = arith.constant 0 : index
    %c0_19 = arith.constant 0 : index
    %29 = vector.load %arg2[%c0_17, %c0_18, %c0_19] : memref<2x8x128xf32, #tpu.memory_space<vmem>>, vector<2x8x128xf32>
    %30 = vector.shape_cast %29 : vector<2x8x128xf32> to vector<16x128xf32>
    %31 = arith.truncf %30 : vector<16x128xf32> to vector<16x128xbf16>
    %c0_20 = arith.constant 0 : index
    %c0_21 = arith.constant 0 : index
    %32 = vector.load %arg7[%c0_20, %c0_21] : memref<128x128xbf16, #tpu.memory_space<vmem>>, vector<128x128xbf16>
    %cst_22 = arith.constant dense<0.000000e+00> : vector<16x128xf32>
    %33 = tpu.matmul %31, %32, %cst_22 {dimension_numbers = #tpu.dot_dimension_numbers<[1], [0], [0], [1], [0, 0, 1, 1], [], []>} : vector<16x128xbf16>, vector<128x128xbf16>, vector<16x128xf32> -> vector<16x128xf32>
    %c0_23 = arith.constant 0 : index
    %c0_24 = arith.constant 0 : index
    %34 = vector.load %arg8[%c0_23, %c0_24] : memref<1x128xf32, #tpu.memory_space<vmem>>, vector<1x128xf32>
    %35 = vector.broadcast %34 : vector<1x128xf32> to vector<16x128xf32>
    %36 = arith.addf %33, %35 : vector<16x128xf32>
    %cst_25 = arith.constant 0.000000e+00 : f32
    %37 = vector.broadcast %cst_25 : f32 to vector<16x128xf32>
    %38 = arith.maximumf %36, %37 : vector<16x128xf32>
    %39 = vector.shape_cast %38 : vector<16x128xf32> to vector<2x8x128xf32>
    %cst_26 = arith.constant dense<0.000000e+00> : vector<8x128xf32>
    %40 = vector.multi_reduction <add>, %39, %cst_26 [0] : vector<2x8x128xf32> to vector<8x128xf32>
    %cst_27 = arith.constant 2.000000e+00 : f32
    %41 = vector.broadcast %cst_27 : f32 to vector<8x128xf32>
    %42 = arith.divf %40, %41 : vector<8x128xf32>
    %43 = arith.truncf %42 : vector<8x128xf32> to vector<8x128xbf16>
    %c0_28 = arith.constant 0 : index
    %c0_29 = arith.constant 0 : index
    %44 = vector.load %arg9[%c0_28, %c0_29] : memref<128x128xbf16, #tpu.memory_space<vmem>>, vector<128x128xbf16>
    %cst_30 = arith.constant dense<0.000000e+00> : vector<8x128xf32>
    %45 = tpu.matmul %43, %44, %cst_30 {dimension_numbers = #tpu.dot_dimension_numbers<[1], [0], [0], [1], [0, 0, 1, 1], [], []>} : vector<8x128xbf16>, vector<128x128xbf16>, vector<8x128xf32> -> vector<8x128xf32>
    %c0_31 = arith.constant 0 : index
    %c0_32 = arith.constant 0 : index
    %46 = vector.load %arg10[%c0_31, %c0_32] : memref<1x128xf32, #tpu.memory_space<vmem>>, vector<1x128xf32>
    %47 = vector.broadcast %46 : vector<1x128xf32> to vector<8x128xf32>
    %48 = arith.addf %45, %47 : vector<8x128xf32>
    %49 = arith.negf %48 : vector<8x128xf32>
    %50 = math.exp %49 : vector<8x128xf32>
    %cst_33 = arith.constant 1.000000e+00 : f32
    %51 = vector.broadcast %cst_33 : f32 to vector<8x128xf32>
    %52 = arith.addf %51, %50 : vector<8x128xf32>
    %53 = arith.divf %51, %52 : vector<8x128xf32>
    %cst_34 = arith.constant dense<0x7F800000> : vector<8x128xf32>
    %54 = vector.multi_reduction <minimumf>, %29, %cst_34 [0] : vector<2x8x128xf32> to vector<8x128xf32>
    %55 = arith.mulf %54, %53 : vector<8x128xf32>
    %c0_35 = arith.constant 0 : index
    %c0_36 = arith.constant 0 : index
    %56 = vector.load %arg12[%c0_35, %c0_36] : memref<8x128xf32, #tpu.memory_space<vmem>>, vector<8x128xf32>
    tpu.vector_store %arg12[%c0_35, %c0_36], %55 {strides = array<i32>} : memref<8x128xf32, #tpu.memory_space<vmem>>, vector<8x128xf32>,
    return
  }
  func.func @transform_0(%arg0: i32) -> (i32, i32, i32) {
    %c0_i32 = arith.constant 0 : i32
    %c0_i32_0 = arith.constant 0 : i32
    %c0_i32_1 = arith.constant 0 : i32
    return %c0_i32, %arg0, %c0_i32_0 : i32, i32, i32
  }
  func.func @transform_1(%arg0: i32) -> (i32, i32, i32) {
    %c0_i32 = arith.constant 0 : i32
    %c0_i32_0 = arith.constant 0 : i32
    %c0_i32_1 = arith.constant 0 : i32
    return %c0_i32, %arg0, %c0_i32_0 : i32, i32, i32
  }
  func.func @transform_2(%arg0: i32) -> (i32, i32) {
    %c0_i32 = arith.constant 0 : i32
    %c0_i32_0 = arith.constant 0 : i32
    %c0_i32_1 = arith.constant 0 : i32
    return %c0_i32, %c0_i32_0 : i32, i32
  }
  func.func @transform_3(%arg0: i32) -> (i32, i32) {
    %c0_i32 = arith.constant 0 : i32
    %c0_i32_0 = arith.constant 0 : i32
    %c0_i32_1 = arith.constant 0 : i32
    return %c0_i32, %c0_i32_0 : i32, i32
  }
  func.func @transform_4(%arg0: i32) -> (i32, i32) {
    %c0_i32 = arith.constant 0 : i32
    %c0_i32_0 = arith.constant 0 : i32
    %c0_i32_1 = arith.constant 0 : i32
    return %c0_i32, %c0_i32_0 : i32, i32
  }
  func.func @transform_5(%arg0: i32) -> (i32, i32) {
    %c0_i32 = arith.constant 0 : i32
    %c0_i32_0 = arith.constant 0 : i32
    %c0_i32_1 = arith.constant 0 : i32
    return %c0_i32, %c0_i32_0 : i32, i32
  }
  func.func @transform_6(%arg0: i32) -> (i32, i32) {
    %c0_i32 = arith.constant 0 : i32
    %c0_i32_0 = arith.constant 0 : i32
    %c0_i32_1 = arith.constant 0 : i32
    return %c0_i32, %c0_i32_0 : i32, i32
  }
  func.func @transform_7(%arg0: i32) -> (i32, i32) {
    %c0_i32 = arith.constant 0 : i32
    %c0_i32_0 = arith.constant 0 : i32
    %c0_i32_1 = arith.constant 0 : i32
    return %c0_i32, %c0_i32_0 : i32, i32
  }
  func.func @transform_8(%arg0: i32) -> (i32, i32) {
    %c0_i32 = arith.constant 0 : i32
    %c0_i32_0 = arith.constant 0 : i32
    %c0_i32_1 = arith.constant 0 : i32
    return %c0_i32, %c0_i32_0 : i32, i32
  }
  func.func @transform_9(%arg0: i32) -> (i32, i32) {
    %c0_i32 = arith.constant 0 : i32
    %c0_i32_0 = arith.constant 0 : i32
    %c0_i32_1 = arith.constant 0 : i32
    return %c0_i32, %c0_i32_0 : i32, i32
  }
  func.func @transform_10(%arg0: i32) -> (i32, i32) {
    %c0_i32 = arith.constant 0 : i32
    %c0_i32_0 = arith.constant 0 : i32
    return %arg0, %c0_i32 : i32, i32
  }
  func.func @transform_11(%arg0: i32) -> (i32, i32) {
    %c0_i32 = arith.constant 0 : i32
    %c0_i32_0 = arith.constant 0 : i32
    return %arg0, %c0_i32 : i32, i32
  }
}

</mosaic_0001>

<llo_original>
// kernel: tpu_custom_call.1
$region0: #{tpu_custom_call.1}
  #allocation0 [shape = 'u32[]', space=smem, size = 0x4, offset = 0x4, fixed_abs, tag = 'smem constant byte address 0x4 - core index']
  #allocation1 [shape = 'u32[144,128]{1,0:T(1,128)}', space=vmem, size = 0x12000, scoped, tag = 'internal scratch']
  %s0 = inlined_call_operand.hbm [shape: f32[2,8,128], index: 0, kind: input, shape index: {}]
  %s1 = inlined_call_operand.hbm [shape: f32[2,8,128], index: 1, kind: input, shape index: {}]
  %s2 = inlined_call_operand.hbm [shape: bf16[128,128], index: 2, kind: input, shape index: {}]
  %s3 = inlined_call_operand.vmem [shape: f32[1,128], index: 3, kind: input, shape index: {}]
  %s4 = inlined_call_operand.hbm [shape: bf16[128,128], index: 4, kind: input, shape index: {}]
  %s5 = inlined_call_operand.vmem [shape: f32[1,128], index: 5, kind: input, shape index: {}]
  %s6 = inlined_call_operand.hbm [shape: bf16[128,128], index: 6, kind: input, shape index: {}]
  %s7 = inlined_call_operand.vmem [shape: f32[1,128], index: 7, kind: input, shape index: {}]
  %s8 = inlined_call_operand.hbm [shape: bf16[128,128], index: 8, kind: input, shape index: {}]
  %s9 = inlined_call_operand.vmem [shape: f32[1,128], index: 9, kind: input, shape index: {}]
  %s10 = inlined_call_operand.hbm [shape: f32[8,128], index: 10, kind: output, shape index: {0}]
  %s11 = inlined_call_operand.hbm [shape: f32[8,128], index: 11, kind: output, shape index: {1}]
  %12 = xla_tuple %s10, %s11
  %s13 = sld [smem:[#allocation0]]
  $region82: #{tpu_custom_call.1} parent=0
    _
  %s15 = ssub.s32 1, %s13
  %s16 = scalar_select 0, %s15, %s13
  $region1: #{tpu_custom_call.1} parent=0
    #allocation2 [shape = 'u8[8192]{0}', space=vmem, size = 0x2000, scoped, tag = 'input window, operand 0, single buffered']
    #allocation3 [shape = 's32[1]{0}', space=sflag, size = 0x4, scoped, tag = 'scoped memory for tpu_custom_call.1']
    #allocation4 [shape = 's32[1]{0}', space=sflag, size = 0x4, scoped, tag = 'scoped memory for tpu_custom_call.1']
    #allocation5 [shape = 'u8[8192]{0}', space=vmem, size = 0x2000, scoped, tag = 'input window, operand 1, single buffered']
    #allocation6 [shape = 's32[1]{0}', space=sflag, size = 0x4, scoped, tag = 'scoped memory for tpu_custom_call.1']
    #allocation7 [shape = 'u8[32768]{0}', space=vmem, size = 0x8000, scoped, tag = 'input window, operand 2, single buffered']
    #allocation8 [shape = 'u8[32768]{0}', space=vmem, size = 0x8000, scoped, tag = 'input window, operand 4, single buffered']
    #allocation9 [shape = 's32[1]{0}', space=sflag, size = 0x4, scoped, tag = 'scoped memory for tpu_custom_call.1']
    #allocation10 [shape = 'u8[32768]{0}', space=vmem, size = 0x8000, scoped, tag = 'input window, operand 6, single buffered']
    #allocation11 [shape = 'u8[32768]{0}', space=vmem, size = 0x8000, scoped, tag = 'input window, operand 8, single buffered']
    #allocation12 [shape = 's32[1]{0}', space=sflag, size = 0x4, scoped, tag = 'scoped memory for tpu_custom_call.1']
    #allocation13 [shape = 'u8[4096]{0}', space=vmem, size = 0x1000, scoped, tag = 'output window, operand 0, single buffered']
    #allocation14 [shape = 'u8[4096]{0}', space=vmem, size = 0x1000, scoped, tag = 'output window, operand 1, single buffered']
    #allocation15 [shape = 's32[1]{0}', space=sflag, size = 0x4, scoped, tag = 'scoped memory for tpu_custom_call.1']
    %17 = vsyncpa [#allocation3], 0
    %18 = vsyncpa [#allocation6], 0
    %19 = vsyncpa [#allocation9], 0
    %20 = vsyncpa [#allocation12], 0
    %21 = vsyncpa [#allocation4], 0
    %22 = vsyncpa [#allocation15], 0
    // Predicated region
    $region2: #{tpu_custom_call.1} parent=1 // pred_check
      _
    $region3: #{tpu_custom_call.1} parent=1 // pred_check_branch
      %24 = sbr.rel (0) target = $region5
    $region4: #{tpu_custom_call.1} parent=1 // pred_region
      %s26 = ssub.s32 256, 256
      %27 = vsyncadd [#allocation3], %s26
      %s28 = sshll.u32 [#allocation2], 4
      %s29 = int_to_ptr.vmem [resolvable:$true] %s28
      %34 = dma.hbm_to_vmem [thread:$0]  %s0, 256, %s29, [#allocation3], 128, 128, 8
    $region5: #{tpu_custom_call.1} parent=1 // pred_fallthru
      _
    // Predicated region
    $region6: #{tpu_custom_call.1} parent=1 // pred_check
      _
    $region7: #{tpu_custom_call.1} parent=1 // pred_check_branch
      %36 = sbr.rel (0) target = $region9
    $region8: #{tpu_custom_call.1} parent=1 // pred_region
      %s38 = ssub.s32 256, 256
      %39 = vsyncadd [#allocation6], %s38
      %s40 = sshll.u32 [#allocation5], 4
      %s41 = int_to_ptr.vmem [resolvable:$true] %s40
      %46 = dma.hbm_to_vmem [thread:$0]  %s1, 256, %s41, [#allocation6], 128, 128, 8
    $region9: #{tpu_custom_call.1} parent=1 // pred_fallthru
      _
    // Predicated region
    $region10: #{tpu_custom_call.1} parent=1 // pred_check
      _
    $region11: #{tpu_custom_call.1} parent=1 // pred_check_branch
      %48 = sbr.rel (0) target = $region13
    $region12: #{tpu_custom_call.1} parent=1 // pred_region
      %s50 = ssub.s32 1024, 1024
      %51 = vsyncadd [#allocation6], %s50
      %s52 = sshll.u32 [#allocation7], 4
      %s53 = int_to_ptr.vmem [resolvable:$true] %s52
      %58 = dma.hbm_to_vmem [thread:$0]  %s2, 1024, %s53, [#allocation6], 64, 64, 4
    $region13: #{tpu_custom_call.1} parent=1 // pred_fallthru
      _
    // Predicated region
    $region14: #{tpu_custom_call.1} parent=1 // pred_check
      _
    $region15: #{tpu_custom_call.1} parent=1 // pred_check_branch
      %60 = sbr.rel (0) target = $region17
    $region16: #{tpu_custom_call.1} parent=1 // pred_region
      _
    $region17: #{tpu_custom_call.1} parent=1 // pred_fallthru
      _
    // Predicated region
    $region18: #{tpu_custom_call.1} parent=1 // pred_check
      _
    $region19: #{tpu_custom_call.1} parent=1 // pred_check_branch
      %62 = sbr.rel (0) target = $region21
    $region20: #{tpu_custom_call.1} parent=1 // pred_region
      %s64 = ssub.s32 1024, 1024
      %65 = vsyncadd [#allocation9], %s64
      %s66 = sshll.u32 [#allocation8], 4
      %s67 = int_to_ptr.vmem [resolvable:$true] %s66
      %72 = dma.hbm_to_vmem [thread:$0]  %s4, 1024, %s67, [#allocation9], 64, 64, 4
    $region21: #{tpu_custom_call.1} parent=1 // pred_fallthru
      _
    // Predicated region
    $region22: #{tpu_custom_call.1} parent=1 // pred_check
      _
    $region23: #{tpu_custom_call.1} parent=1 // pred_check_branch
      %74 = sbr.rel (0) target = $region25
    $region24: #{tpu_custom_call.1} parent=1 // pred_region
      _
    $region25: #{tpu_custom_call.1} parent=1 // pred_fallthru
      _
    // Predicated region
    $region26: #{tpu_custom_call.1} parent=1 // pred_check
      _
    $region27: #{tpu_custom_call.1} parent=1 // pred_check_branch
      %76 = sbr.rel (0) target = $region29
    $region28: #{tpu_custom_call.1} parent=1 // pred_region
      %s78 = ssub.s32 1024, 1024
      %79 = vsyncadd [#allocation9], %s78
      %s80 = sshll.u32 [#allocation10], 4
      %s81 = int_to_ptr.vmem [resolvable:$true] %s80
      %86 = dma.hbm_to_vmem [thread:$0]  %s6, 1024, %s81, [#allocation9], 64, 64, 4
    $region29: #{tpu_custom_call.1} parent=1 // pred_fallthru
      _
    // Predicated region
    $region30: #{tpu_custom_call.1} parent=1 // pred_check
      _
    $region31: #{tpu_custom_call.1} parent=1 // pred_check_branch
      %88 = sbr.rel (0) target = $region33
    $region32: #{tpu_custom_call.1} parent=1 // pred_region
      _
    $region33: #{tpu_custom_call.1} parent=1 // pred_fallthru
      _
    // Predicated region
    $region34: #{tpu_custom_call.1} parent=1 // pred_check
      _
    $region35: #{tpu_custom_call.1} parent=1 // pred_check_branch
      %90 = sbr.rel (0) target = $region37
    $region36: #{tpu_custom_call.1} parent=1 // pred_region
      %s92 = ssub.s32 1024, 1024
      %93 = vsyncadd [#allocation12], %s92
      %s94 = sshll.u32 [#allocation11], 4
      %s95 = int_to_ptr.vmem [resolvable:$true] %s94
      %100 = dma.hbm_to_vmem [thread:$0]  %s8, 1024, %s95, [#allocation12], 64, 64, 4
    $region37: #{tpu_custom_call.1} parent=1 // pred_fallthru
      _
    // Predicated region
    $region38: #{tpu_custom_call.1} parent=1 // pred_check
      _
    $region39: #{tpu_custom_call.1} parent=1 // pred_check_branch
      %102 = sbr.rel (0) target = $region41
    $region40: #{tpu_custom_call.1} parent=1 // pred_region
      _
    $region41: #{tpu_custom_call.1} parent=1 // pred_fallthru
      _
    // Predicated region
    $region42: #{tpu_custom_call.1} parent=1 // pred_check
      _
    $region43: #{tpu_custom_call.1} parent=1 // pred_check_branch
      %104 = sbr.rel (0) target = $region45
    $region44: #{tpu_custom_call.1} parent=1 // pred_region
      %105 = dma.done [#allocation3], 256
    $region45: #{tpu_custom_call.1} parent=1 // pred_fallthru
      _
    // Predicated region
    $region46: #{tpu_custom_call.1} parent=1 // pred_check
      _
    $region47: #{tpu_custom_call.1} parent=1 // pred_check_branch
      %107 = sbr.rel (0) target = $region49
    $region48: #{tpu_custom_call.1} parent=1 // pred_region
      %108 = dma.done [#allocation6], 256
    $region49: #{tpu_custom_call.1} parent=1 // pred_fallthru
      _
    // Predicated region
    $region50: #{tpu_custom_call.1} parent=1 // pred_check
      _
    $region51: #{tpu_custom_call.1} parent=1 // pred_check_branch
      %110 = sbr.rel (0) target = $region53
    $region52: #{tpu_custom_call.1} parent=1 // pred_region
      %111 = dma.done [#allocation6], 1024
    $region53: #{tpu_custom_call.1} parent=1 // pred_fallthru
      _
    // Predicated region
    $region54: #{tpu_custom_call.1} parent=1 // pred_check
      _
    $region55: #{tpu_custom_call.1} parent=1 // pred_check_branch
      %113 = sbr.rel (0) target = $region57
    $region56: #{tpu_custom_call.1} parent=1 // pred_region
      %114 = dma.done [#allocation9], 1024
    $region57: #{tpu_custom_call.1} parent=1 // pred_fallthru
      _
    // Predicated region
    $region58: #{tpu_custom_call.1} parent=1 // pred_check
      _
    $region59: #{tpu_custom_call.1} parent=1 // pred_check_branch
      %116 = sbr.rel (0) target = $region61
    $region60: #{tpu_custom_call.1} parent=1 // pred_region
      %117 = dma.done [#allocation9], 1024
    $region61: #{tpu_custom_call.1} parent=1 // pred_fallthru
      _
    // Predicated region
    $region62: #{tpu_custom_call.1} parent=1 // pred_check
      _
    $region63: #{tpu_custom_call.1} parent=1 // pred_check_branch
      %119 = sbr.rel (0) target = $region65
    $region64: #{tpu_custom_call.1} parent=1 // pred_region
      %120 = dma.done [#allocation12], 1024
    $region65: #{tpu_custom_call.1} parent=1 // pred_fallthru
      _
    %v122 = vld [vmem:[#allocation2] sm:$0xff]
    %v123 = vld [vmem:[#allocation2 + $0x8] sm:$0xff]
    %v124 = vpack.c.bf16 %v123, %v122
    %v125 = vld [vmem:[#allocation7] sm:$0xf]
    %v126 = vld [vmem:[#allocation7 + $0x4] sm:$0xf]
    %v127 = vld [vmem:[#allocation7 + $0x8] sm:$0xf]
    %v128 = vld [vmem:[#allocation7 + $0xc] sm:$0xf]
    %v129 = vld [vmem:[#allocation7 + $0x10] sm:$0xf]
    %v130 = vld [vmem:[#allocation7 + $0x14] sm:$0xf]
    %v131 = vld [vmem:[#allocation7 + $0x18] sm:$0xf]
    %v132 = vld [vmem:[#allocation7 + $0x1c] sm:$0xf]
    %v133 = vld [vmem:[#allocation7 + $0x20] sm:$0xf]
    %v134 = vld [vmem:[#allocation7 + $0x24] sm:$0xf]
    %v135 = vld [vmem:[#allocation7 + $0x28] sm:$0xf]
    %v136 = vld [vmem:[#allocation7 + $0x2c] sm:$0xf]
    %v137 = vld [vmem:[#allocation7 + $0x30] sm:$0xf]
    %v138 = vld [vmem:[#allocation7 + $0x34] sm:$0xf]
    %v139 = vld [vmem:[#allocation7 + $0x38] sm:$0xf]
    %v140 = vld [vmem:[#allocation7 + $0x3c] sm:$0xf]
    %v141 = vld [vmem:[%s3] sm:$0x1]
    %v143 = vlaneseq
    %v144 = vshrl.u32 %v143, 7
    %v145 = vsub.s32 0, %v144
    %v146 = vrot.slane %v141, %v145
    %v164 = vunpack.c.l.b16 %v125
    %v165 = vunpack.c.l.b16 %v126
    %v166 = vunpack.c.l.b16 %v127
    %v167 = vunpack.c.l.b16 %v128
    %v168 = vunpack.c.l.b16 %v129
    %v169 = vunpack.c.l.b16 %v130
    %v170 = vunpack.c.l.b16 %v131
    %v171 = vunpack.c.l.b16 %v132
    %v172 = vunpack.c.l.b16 %v133
    %v173 = vunpack.c.l.b16 %v134
    %v174 = vunpack.c.l.b16 %v135
    %v175 = vunpack.c.l.b16 %v136
    %v176 = vunpack.c.l.b16 %v137
    %v177 = vunpack.c.l.b16 %v138
    %v178 = vunpack.c.l.b16 %v139
    %v179 = vunpack.c.l.b16 %v140
    %v180 = vpack.c.b16 %v165, %v164
    %v181 = vpack.c.b16 %v167, %v166
    %v182 = vpack.c.b16 %v169, %v168
    %v183 = vpack.c.b16 %v171, %v170
    %v184 = vpack.c.b16 %v173, %v172
    %v185 = vpack.c.b16 %v175, %v174
    %v186 = vpack.c.b16 %v177, %v176
    %v187 = vpack.c.b16 %v179, %v178
    %196 = vmatprep.subr.bf16.mxu0 0
    %197 = vmatpush1.bf16.msra.mxu0 %v180
    %198 = vmatprep.subr.bf16.mxu0 0
    %199 = vmatpush1.bf16.msra.mxu0 %v181
    %200 = vmatprep.subr.bf16.mxu0 0
    %201 = vmatpush1.bf16.msra.mxu0 %v182
    %202 = vmatprep.subr.bf16.mxu0 0
    %203 = vmatpush1.bf16.msra.mxu0 %v183
    %204 = vmatprep.subr.bf16.mxu0 0
    %205 = vmatpush1.bf16.msra.mxu0 %v184
    %206 = vmatprep.subr.bf16.mxu0 0
    %207 = vmatpush1.bf16.msra.mxu0 %v185
    %208 = vmatprep.subr.bf16.mxu0 0
    %209 = vmatpush1.bf16.msra.mxu0 %v186
    %210 = vmatprep.subr.bf16.mxu0 0
    %211 = vmatpush1.bf16.msra.mxu0 %v187
    %212 = vmatprep.subr.bf16.mxu0 0
    %213 = vmatpush1.bf16.msra.mxu0 0
    %214 = vmatprep.subr.bf16.mxu0 0
    %215 = vmatpush1.bf16.msra.mxu0 0
    %216 = vmatprep.subr.bf16.mxu0 0
    %217 = vmatpush1.bf16.msra.mxu0 0
    %218 = vmatprep.subr.bf16.mxu0 0
    %219 = vmatpush1.bf16.msra.mxu0 0
    %220 = vmatprep.subr.bf16.mxu0 0
    %221 = vmatpush1.bf16.msra.mxu0 0
    %222 = vmatprep.subr.bf16.mxu0 0
    %223 = vmatpush1.bf16.msra.mxu0 0
    %224 = vmatprep.subr.bf16.mxu0 0
    %225 = vmatpush1.bf16.msra.mxu0 0
    %226 = vmatprep.subr.bf16.mxu0 0
    %227 = vmatpush1.bf16.msra.mxu0 0
    %228 = vmatprep.mubr.bf16.mxu0 0
    %229 = vmatmul.mubr.bf16.gmra.mrb[0].mxu0 %v124
    %v230 = vpop.f32.mrb[0].mxu0
    %v231 = vadd.f32 %v146, %v230
    %v232 = vpop.f32.mrb[0].mxu0
    %v233 = vpop.f32.mrb[0].mxu0
    %v234 = vadd.f32 %v146, %v233
    %v235 = vpop.f32.mrb[0].mxu0
    %236 = vdwg.mxu0
    %v237 = vmax.f32 %v231, 0.0
    %v238 = vmax.f32 %v234, 0.0
    %v239 = vpack.c.bf16 %v238, %v237
    %v240 = vld [vmem:[#allocation8] sm:$0xf]
    %v241 = vld [vmem:[#allocation8 + $0x4] sm:$0xf]
    %v242 = vld [vmem:[#allocation8 + $0x8] sm:$0xf]
    %v243 = vld [vmem:[#allocation8 + $0xc] sm:$0xf]
    %v244 = vld [vmem:[#allocation8 + $0x10] sm:$0xf]
    %v245 = vld [vmem:[#allocation8 + $0x14] sm:$0xf]
    %v246 = vld [vmem:[#allocation8 + $0x18] sm:$0xf]
    %v247 = vld [vmem:[#allocation8 + $0x1c] sm:$0xf]
    %v248 = vld [vmem:[#allocation8 + $0x20] sm:$0xf]
    %v249 = vld [vmem:[#allocation8 + $0x24] sm:$0xf]
    %v250 = vld [vmem:[#allocation8 + $0x28] sm:$0xf]
    %v251 = vld [vmem:[#allocation8 + $0x2c] sm:$0xf]
    %v252 = vld [vmem:[#allocation8 + $0x30] sm:$0xf]
    %v253 = vld [vmem:[#allocation8 + $0x34] sm:$0xf]
    %v254 = vld [vmem:[#allocation8 + $0x38] sm:$0xf]
    %v255 = vld [vmem:[#allocation8 + $0x3c] sm:$0xf]
    %v256 = vld [vmem:[%s5] sm:$0x1]
    %v258 = vlaneseq
    %v259 = vshrl.u32 %v258, 7
    %v260 = vsub.s32 0, %v259
    %v261 = vrot.slane %v256, %v260
    %v279 = vunpack.c.l.b16 %v240
    %v280 = vunpack.c.l.b16 %v241
    %v281 = vunpack.c.l.b16 %v242
    %v282 = vunpack.c.l.b16 %v243
    %v283 = vunpack.c.l.b16 %v244
    %v284 = vunpack.c.l.b16 %v245
    %v285 = vunpack.c.l.b16 %v246
    %v286 = vunpack.c.l.b16 %v247
    %v287 = vunpack.c.l.b16 %v248
    %v288 = vunpack.c.l.b16 %v249
    %v289 = vunpack.c.l.b16 %v250
    %v290 = vunpack.c.l.b16 %v251
    %v291 = vunpack.c.l.b16 %v252
    %v292 = vunpack.c.l.b16 %v253
    %v293 = vunpack.c.l.b16 %v254
    %v294 = vunpack.c.l.b16 %v255
    %v295 = vpack.c.b16 %v280, %v279
    %v296 = vpack.c.b16 %v282, %v281
    %v297 = vpack.c.b16 %v284, %v283
    %v298 = vpack.c.b16 %v286, %v285
    %v299 = vpack.c.b16 %v288, %v287
    %v300 = vpack.c.b16 %v290, %v289
    %v301 = vpack.c.b16 %v292, %v291
    %v302 = vpack.c.b16 %v294, %v293
    %311 = vmatprep.subr.bf16.mxu0 0
    %312 = vmatpush1.bf16.msra.mxu0 %v295
    %313 = vmatprep.subr.bf16.mxu0 0
    %314 = vmatpush1.bf16.msra.mxu0 %v296
    %315 = vmatprep.subr.bf16.mxu0 0
    %316 = vmatpush1.bf16.msra.mxu0 %v297
    %317 = vmatprep.subr.bf16.mxu0 0
    %318 = vmatpush1.bf16.msra.mxu0 %v298
    %319 = vmatprep.subr.bf16.mxu0 0
    %320 = vmatpush1.bf16.msra.mxu0 %v299
    %321 = vmatprep.subr.bf16.mxu0 0
    %322 = vmatpush1.bf16.msra.mxu0 %v300
    %323 = vmatprep.subr.bf16.mxu0 0
    %324 = vmatpush1.bf16.msra.mxu0 %v301
    %325 = vmatprep.subr.bf16.mxu0 0
    %326 = vmatpush1.bf16.msra.mxu0 %v302
    %327 = vmatprep.subr.bf16.mxu0 0
    %328 = vmatpush1.bf16.msra.mxu0 0
    %329 = vmatprep.subr.bf16.mxu0 0
    %330 = vmatpush1.bf16.msra.mxu0 0
    %331 = vmatprep.subr.bf16.mxu0 0
    %332 = vmatpush1.bf16.msra.mxu0 0
    %333 = vmatprep.subr.bf16.mxu0 0
    %334 = vmatpush1.bf16.msra.mxu0 0
    %335 = vmatprep.subr.bf16.mxu0 0
    %336 = vmatpush1.bf16.msra.mxu0 0
    %337 = vmatprep.subr.bf16.mxu0 0
    %338 = vmatpush1.bf16.msra.mxu0 0
    %339 = vmatprep.subr.bf16.mxu0 0
    %340 = vmatpush1.bf16.msra.mxu0 0
    %341 = vmatprep.subr.bf16.mxu0 0
    %342 = vmatpush1.bf16.msra.mxu0 0
    %343 = vmatprep.mubr.bf16.mxu0 0
    %344 = vmatmul.mubr.bf16.gmra.mrb[0].mxu0 %v239
    %v345 = vpop.f32.mrb[0].mxu0
    %v346 = vadd.f32 %v261, %v345
    %v347 = vpop.f32.mrb[0].mxu0
    %v348 = vpop.f32.mrb[0].mxu0
    %v349 = vadd.f32 %v261, %v348
    %v350 = vpop.f32.mrb[0].mxu0
    %351 = vdwg.mxu0
    %v352 = vmax.f32 %v346, %v349
    %v353 = vsub.f32 %v346, %v352
    %v354 = vsub.f32 %v349, %v352
    %v355 = vmul.f32 %v353, 1.442695
    %v356 = vpow.pop %v355
    %v357 = vmul.f32 %v354, 1.442695
    %v358 = vpow.pop %v357
    %v359 = vadd.f32 %v356, %v358
    %v360 = vrcp.pop %v359
    %v361 = vmul.f32 %v356, %v360
    %v362 = vmul.f32 %v358, %v360
    %v363 = vmul.f32 %v361, %v122
    %v364 = vmul.f32 %v362, %v123
    %v365 = vadd.f32 %v363, %v364
    %366 = vst [vmem:[#allocation13] sm:$0xff] %v365
    %v367 = vld [vmem:[#allocation5] sm:$0xff]
    %v368 = vld [vmem:[#allocation5 + $0x8] sm:$0xff]
    %v369 = vpack.c.bf16 %v368, %v367
    %v370 = vld [vmem:[#allocation10] sm:$0xf]
    %v371 = vld [vmem:[#allocation10 + $0x4] sm:$0xf]
    %v372 = vld [vmem:[#allocation10 + $0x8] sm:$0xf]
    %v373 = vld [vmem:[#allocation10 + $0xc] sm:$0xf]
    %v374 = vld [vmem:[#allocation10 + $0x10] sm:$0xf]
    %v375 = vld [vmem:[#allocation10 + $0x14] sm:$0xf]
    %v376 = vld [vmem:[#allocation10 + $0x18] sm:$0xf]
    %v377 = vld [vmem:[#allocation10 + $0x1c] sm:$0xf]
    %v378 = vld [vmem:[#allocation10 + $0x20] sm:$0xf]
    %v379 = vld [vmem:[#allocation10 + $0x24] sm:$0xf]
    %v380 = vld [vmem:[#allocation10 + $0x28] sm:$0xf]
    %v381 = vld [vmem:[#allocation10 + $0x2c] sm:$0xf]
    %v382 = vld [vmem:[#allocation10 + $0x30] sm:$0xf]
    %v383 = vld [vmem:[#allocation10 + $0x34] sm:$0xf]
    %v384 = vld [vmem:[#allocation10 + $0x38] sm:$0xf]
    %v385 = vld [vmem:[#allocation10 + $0x3c] sm:$0xf]
    %v386 = vld [vmem:[%s7] sm:$0x1]
    %v388 = vlaneseq
    %v389 = vshrl.u32 %v388, 7
    %v390 = vsub.s32 0, %v389
    %v391 = vrot.slane %v386, %v390
    %v409 = vunpack.c.l.b16 %v370
    %v410 = vunpack.c.l.b16 %v371
    %v411 = vunpack.c.l.b16 %v372
    %v412 = vunpack.c.l.b16 %v373
    %v413 = vunpack.c.l.b16 %v374
    %v414 = vunpack.c.l.b16 %v375
    %v415 = vunpack.c.l.b16 %v376
    %v416 = vunpack.c.l.b16 %v377
    %v417 = vunpack.c.l.b16 %v378
    %v418 = vunpack.c.l.b16 %v379
    %v419 = vunpack.c.l.b16 %v380
    %v420 = vunpack.c.l.b16 %v381
    %v421 = vunpack.c.l.b16 %v382
    %v422 = vunpack.c.l.b16 %v383
    %v423 = vunpack.c.l.b16 %v384
    %v424 = vunpack.c.l.b16 %v385
    %v425 = vpack.c.b16 %v410, %v409
    %v426 = vpack.c.b16 %v412, %v411
    %v427 = vpack.c.b16 %v414, %v413
    %v428 = vpack.c.b16 %v416, %v415
    %v429 = vpack.c.b16 %v418, %v417
    %v430 = vpack.c.b16 %v420, %v419
    %v431 = vpack.c.b16 %v422, %v421
    %v432 = vpack.c.b16 %v424, %v423
    %441 = vmatprep.subr.bf16.mxu0 0
    %442 = vmatpush1.bf16.msra.mxu0 %v425
    %443 = vmatprep.subr.bf16.mxu0 0
    %444 = vmatpush1.bf16.msra.mxu0 %v426
    %445 = vmatprep.subr.bf16.mxu0 0
    %446 = vmatpush1.bf16.msra.mxu0 %v427
    %447 = vmatprep.subr.bf16.mxu0 0
    %448 = vmatpush1.bf16.msra.mxu0 %v428
    %449 = vmatprep.subr.bf16.mxu0 0
    %450 = vmatpush1.bf16.msra.mxu0 %v429
    %451 = vmatprep.subr.bf16.mxu0 0
    %452 = vmatpush1.bf16.msra.mxu0 %v430
    %453 = vmatprep.subr.bf16.mxu0 0
    %454 = vmatpush1.bf16.msra.mxu0 %v431
    %455 = vmatprep.subr.bf16.mxu0 0
    %456 = vmatpush1.bf16.msra.mxu0 %v432
    %457 = vmatprep.subr.bf16.mxu0 0
    %458 = vmatpush1.bf16.msra.mxu0 0
    %459 = vmatprep.subr.bf16.mxu0 0
    %460 = vmatpush1.bf16.msra.mxu0 0
    %461 = vmatprep.subr.bf16.mxu0 0
    %462 = vmatpush1.bf16.msra.mxu0 0
    %463 = vmatprep.subr.bf16.mxu0 0
    %464 = vmatpush1.bf16.msra.mxu0 0
    %465 = vmatprep.subr.bf16.mxu0 0
    %466 = vmatpush1.bf16.msra.mxu0 0
    %467 = vmatprep.subr.bf16.mxu0 0
    %468 = vmatpush1.bf16.msra.mxu0 0
    %469 = vmatprep.subr.bf16.mxu0 0
    %470 = vmatpush1.bf16.msra.mxu0 0
    %471 = vmatprep.subr.bf16.mxu0 0
    %472 = vmatpush1.bf16.msra.mxu0 0
    %473 = vmatprep.mubr.bf16.mxu0 0
    %474 = vmatmul.mubr.bf16.gmra.mrb[0].mxu0 %v369
    %v475 = vpop.f32.mrb[0].mxu0
    %v476 = vadd.f32 %v391, %v475
    %v477 = vpop.f32.mrb[0].mxu0
    %v478 = vpop.f32.mrb[0].mxu0
    %v479 = vadd.f32 %v391, %v478
    %v480 = vpop.f32.mrb[0].mxu0
    %481 = vdwg.mxu0
    %v482 = vmax.f32 %v476, 0.0
    %v483 = vmax.f32 %v479, 0.0
    %v484 = vadd.f32 %v482, %v483
    %v485 = vrcp.pop 2.0
    %v486 = vmul.f32 %v484, %v485
    %v487 = vpack.c.bf16 %v486, %v486
    %v488 = vld [vmem:[#allocation11] sm:$0xf]
    %v489 = vld [vmem:[#allocation11 + $0x4] sm:$0xf]
    %v490 = vld [vmem:[#allocation11 + $0x8] sm:$0xf]
    %v491 = vld [vmem:[#allocation11 + $0xc] sm:$0xf]
    %v492 = vld [vmem:[#allocation11 + $0x10] sm:$0xf]
    %v493 = vld [vmem:[#allocation11 + $0x14] sm:$0xf]
    %v494 = vld [vmem:[#allocation11 + $0x18] sm:$0xf]
    %v495 = vld [vmem:[#allocation11 + $0x1c] sm:$0xf]
    %v496 = vld [vmem:[#allocation11 + $0x20] sm:$0xf]
    %v497 = vld [vmem:[#allocation11 + $0x24] sm:$0xf]
    %v498 = vld [vmem:[#allocation11 + $0x28] sm:$0xf]
    %v499 = vld [vmem:[#allocation11 + $0x2c] sm:$0xf]
    %v500 = vld [vmem:[#allocation11 + $0x30] sm:$0xf]
    %v501 = vld [vmem:[#allocation11 + $0x34] sm:$0xf]
    %v502 = vld [vmem:[#allocation11 + $0x38] sm:$0xf]
    %v503 = vld [vmem:[#allocation11 + $0x3c] sm:$0xf]
    %v504 = vld [vmem:[%s9] sm:$0x1]
    %v506 = vlaneseq
    %v507 = vshrl.u32 %v506, 7
    %v508 = vsub.s32 0, %v507
    %v509 = vrot.slane %v504, %v508
    %v527 = vunpack.c.l.b16 %v488
    %v528 = vunpack.c.l.b16 %v489
    %v529 = vunpack.c.l.b16 %v490
    %v530 = vunpack.c.l.b16 %v491
    %v531 = vunpack.c.l.b16 %v492
    %v532 = vunpack.c.l.b16 %v493
    %v533 = vunpack.c.l.b16 %v494
    %v534 = vunpack.c.l.b16 %v495
    %v535 = vunpack.c.l.b16 %v496
    %v536 = vunpack.c.l.b16 %v497
    %v537 = vunpack.c.l.b16 %v498
    %v538 = vunpack.c.l.b16 %v499
    %v539 = vunpack.c.l.b16 %v500
    %v540 = vunpack.c.l.b16 %v501
    %v541 = vunpack.c.l.b16 %v502
    %v542 = vunpack.c.l.b16 %v503
    %v543 = vpack.c.b16 %v528, %v527
    %v544 = vpack.c.b16 %v530, %v529
    %v545 = vpack.c.b16 %v532, %v531
    %v546 = vpack.c.b16 %v534, %v533
    %v547 = vpack.c.b16 %v536, %v535
    %v548 = vpack.c.b16 %v538, %v537
    %v549 = vpack.c.b16 %v540, %v539
    %v550 = vpack.c.b16 %v542, %v541
    %559 = vmatprep.subr.bf16.mxu0 0
    %560 = vmatpush1.bf16.msra.mxu0 %v543
    %561 = vmatprep.subr.bf16.mxu0 0
    %562 = vmatpush1.bf16.msra.mxu0 %v544
    %563 = vmatprep.subr.bf16.mxu0 0
    %564 = vmatpush1.bf16.msra.mxu0 %v545
    %565 = vmatprep.subr.bf16.mxu0 0
    %566 = vmatpush1.bf16.msra.mxu0 %v546
    %567 = vmatprep.subr.bf16.mxu0 0
    %568 = vmatpush1.bf16.msra.mxu0 %v547
    %569 = vmatprep.subr.bf16.mxu0 0
    %570 = vmatpush1.bf16.msra.mxu0 %v548
    %571 = vmatprep.subr.bf16.mxu0 0
    %572 = vmatpush1.bf16.msra.mxu0 %v549
    %573 = vmatprep.subr.bf16.mxu0 0
    %574 = vmatpush1.bf16.msra.mxu0 %v550
    %575 = vmatprep.subr.bf16.mxu0 0
    %576 = vmatpush1.bf16.msra.mxu0 0
    %577 = vmatprep.subr.bf16.mxu0 0
    %578 = vmatpush1.bf16.msra.mxu0 0
    %579 = vmatprep.subr.bf16.mxu0 0
    %580 = vmatpush1.bf16.msra.mxu0 0
    %581 = vmatprep.subr.bf16.mxu0 0
    %582 = vmatpush1.bf16.msra.mxu0 0
    %583 = vmatprep.subr.bf16.mxu0 0
    %584 = vmatpush1.bf16.msra.mxu0 0
    %585 = vmatprep.subr.bf16.mxu0 0
    %586 = vmatpush1.bf16.msra.mxu0 0
    %587 = vmatprep.subr.bf16.mxu0 0
    %588 = vmatpush1.bf16.msra.mxu0 0
    %589 = vmatprep.subr.bf16.mxu0 0
    %590 = vmatpush1.bf16.msra.mxu0 0
    %591 = vmatprep.mubr.bf16.mxu0 0
    %592 = vmatmul.mubr.bf16.gmra.mrb[0].mxu0 %v487
    %v593 = vpop.f32.mrb[0].mxu0
    %v594 = vadd.f32 %v509, %v593
    %v595 = vpop.f32.mrb[0].mxu0
    %v596 = vpop.f32.mrb[0].mxu0
    %v597 = vpop.f32.mrb[0].mxu0
    %598 = vdwg.mxu0
    %v599 = vxor.u32 %v594, 2147483648
    %v600 = vmul.f32 %v599, 1.442695
    %v601 = vpow.pop %v600
    %v602 = vadd.f32 %v601, 1.0
    %v603 = vrcp.pop %v602
    %v604 = vmul.f32 1.0, %v603
    %v605 = vmin.f32 %v367, %v368
    %v606 = vmul.f32 %v605, %v604
    %607 = vst [vmem:[#allocation14] sm:$0xff] %v606
    // Predicated region
    $region66: #{tpu_custom_call.1} parent=1 // pred_check
      _
    $region67: #{tpu_custom_call.1} parent=1 // pred_check_branch
      %609 = sbr.rel (0) target = $region69
    $region68: #{tpu_custom_call.1} parent=1 // pred_region
      %s611 = ssub.s32 128, 128
      %612 = vsyncadd [#allocation4], %s611
      %s614 = sshll.u32 [#allocation13], 4
      %s615 = int_to_ptr.vmem [resolvable:$true] %s614
      %617 = dma.vmem_to_hbm [thread:$0]  %s615, 128, %s10, [#allocation4]
    $region69: #{tpu_custom_call.1} parent=1 // pred_fallthru
      _
    // Predicated region
    $region70: #{tpu_custom_call.1} parent=1 // pred_check
      _
    $region71: #{tpu_custom_call.1} parent=1 // pred_check_branch
      %619 = sbr.rel (0) target = $region73
    $region72: #{tpu_custom_call.1} parent=1 // pred_region
      %s621 = ssub.s32 128, 128
      %622 = vsyncadd [#allocation15], %s621
      %s624 = sshll.u32 [#allocation14], 4
      %s625 = int_to_ptr.vmem [resolvable:$true] %s624
      %627 = dma.vmem_to_hbm [thread:$0]  %s625, 128, %s11, [#allocation15]
    $region73: #{tpu_custom_call.1} parent=1 // pred_fallthru
      _
    // Predicated region
    $region74: #{tpu_custom_call.1} parent=1 // pred_check
      _
    $region75: #{tpu_custom_call.1} parent=1 // pred_check_branch
      %629 = sbr.rel (0) target = $region77
    $region76: #{tpu_custom_call.1} parent=1 // pred_region
      %630 = dma.done [#allocation4], 128
    $region77: #{tpu_custom_call.1} parent=1 // pred_fallthru
      _
    // Predicated region
    $region78: #{tpu_custom_call.1} parent=1 // pred_check
      _
    $region79: #{tpu_custom_call.1} parent=1 // pred_check_branch
      %632 = sbr.rel (0) target = $region81
    $region80: #{tpu_custom_call.1} parent=1 // pred_region
      %633 = dma.done [#allocation15], 128
    $region81: #{tpu_custom_call.1} parent=1 // pred_fallthru
      _
    %634 = vsyncpa [#allocation3], 1
    %635 = vsyncpa [#allocation6], 1
    %636 = vsyncpa [#allocation9], 1
    %637 = vsyncpa [#allocation12], 1
    %638 = vsyncpa [#allocation4], 1
    %639 = vsyncpa [#allocation15], 1

</llo_original>
